<compile_context>
chip_gen: v7x
topology: tpu7x:2x2x1
jax: 0.10.0
libtpu: 0.0.40
codegen_flags: <defaults>
</compile_context>

<pallas_src>
import jax
import jax.numpy as jnp
from jax import lax
from jax.experimental import pallas as pl
from jax.experimental.pallas import tpu as pltpu


# ----------------------------------------------------------------------------
# Kernels
# ----------------------------------------------------------------------------

def _noisy_linear_train_kernel(x_ref, wmu_ref, wsig_ref, weps_ref,
                               bmu_ref, bsig_ref, beps_ref, o_ref):
    """Training mode: w = mu + sigma*eps fused per (tk, tn) tile.

    The f32 output block is resident across the k (reduction) axis and is
    used directly as the accumulator (init = noisy bias at k == 0).
    """
    k = pl.program_id(2)

    @pl.when(k == 0)
    def _():
        b = bmu_ref[...] + bsig_ref[...] * beps_ref[...]          # (1, tn) f32
        o_ref[...] = jnp.broadcast_to(b, o_ref.shape)

    # Build the noisy weight tile in f32 on the VPU (v5e has no bf16 VALU),
    # then cast to the streaming/compute dtype for the MXU.
    w = (wmu_ref[...].astype(jnp.float32)
         + wsig_ref[...].astype(jnp.float32) * weps_ref[...].astype(jnp.float32))
    o_ref[...] += lax.dot_general(
        x_ref[...], w.astype(x_ref.dtype),
        dimension_numbers=(((1,), (0,)), ((), ())),               # (M,K)x(K,N)
        preferred_element_type=jnp.float32)


def _plain_linear_kernel(x_ref, w_ref, b_ref, o_ref):
    """Eval mode / precomputed-noise mode: single weight tensor + bias."""
    k = pl.program_id(2)

    @pl.when(k == 0)
    def _():
        o_ref[...] = jnp.broadcast_to(b_ref[...], o_ref.shape)

    o_ref[...] += lax.dot_general(
        x_ref[...], w_ref[...],
        dimension_numbers=(((1,), (0,)), ((), ())),
        preferred_element_type=jnp.float32)


# ----------------------------------------------------------------------------
# Tiling / VMEM heuristics
# ----------------------------------------------------------------------------

def _round_up(x, m):
    return ((x + m - 1) // m) * m


def _largest_tile(padded_dim, cap):
    """Largest multiple of 128 dividing `padded_dim` (a multiple of 128), <= cap."""
    n = padded_dim // 128
    best = 1
    for d in range(1, n + 1):
        if n % d == 0 and d * 128 <= cap:
            best = d
    return best * 128


def _vmem_capacity_bytes():
    try:
        return int(pltpu.get_tpu_info().vmem_capacity_bytes)
    except Exception:
        return 64 * 1024 * 1024   # conservative (v7x-sized) fallback


def _choose_tiles(B, Kp, Np, n_weight_streams, weight_itemsize):
    """Pick (tm, tn, tk, vmem_limit).  Kp/Np are already multiples of 128."""
    Bp8 = _round_up(B, 8)
    vmem_cap = _vmem_capacity_bytes()

    if vmem_cap >= 128 * 1024 * 1024:          # v5e / v6e: 128 MiB VMEM
        cap_m, cap_n, cap_k = 256, 512, 1024
        vmem_limit = 64 * 1024 * 1024
    else:                                      # v7x: 64 MiB physical
        cap_m, cap_n, cap_k = 256, 256, 512
        vmem_limit = 32 * 1024 * 1024

    # Batch-aware: weights are re-streamed (Bp/tm) times, so grow tm first
    # for large batches (x << W, re-fetching x is cheap).
    while Bp8 > cap_m and cap_m < 1024:
        cap_m *= 2

    def pick():
        tm = min(Bp8, cap_m)
        tn = _largest_tile(Np, cap_n)
        tk = _largest_tile(Kp, cap_k)
        return tm, tn, tk

    def footprint(tm, tn, tk):
        ins = 2 * (tm * tk + n_weight_streams * tk * tn) * weight_itemsize
        outs = 2 * tm * tn * 4                 # resident f32 output block
        bias = 2 * 3 * tn * 4
        return ins + outs + bias

    budget = int(0.7 * vmem_limit)
    while footprint(*pick()) > budget:
        if cap_k > 128 and cap_k >= cap_n:
            cap_k //= 2
        elif cap_n > 128:
            cap_n //= 2
        elif cap_m > 8:
            cap_m //= 2
        else:
            break
    tm, tn, tk = pick()

    # v7x has 2 TensorCores: make sure there are >= 2 "parallel" (i, j) tiles
    # when the problem allows it, so the second core isn't idle.
    n_parallel = ((Bp8 + tm - 1) // tm) * (Np // tn)
    if n_parallel < 2 and tn > 128 and Np >= 256:
        tn = _largest_tile(Np, tn // 2)

    return tm, tn, tk, vmem_limit


# ----------------------------------------------------------------------------
# Parameter preparation (run once per reset_noise / parameter update)
# ----------------------------------------------------------------------------

def prepare_noisy_linear(weight_mu, weight_sigma, weight_epsilon,
                         bias_mu, bias_sigma, bias_epsilon,
                         compute_dtype=jnp.float32):
    """Pad to tile-aligned shapes, transpose to (in_f, out_f) and cast the
    big weight streams to `compute_dtype` ONCE, so the per-forward kernel
    streams exactly these bytes from HBM (no per-call pad/copy/cast)."""
    out_f, in_f = weight_mu.shape
    Kp = _round_up(in_f, 128)
    Np = _round_up(out_f, 128)

    def prep_w(w):
        wp = jnp.pad(w, ((0, Np - out_f), (0, Kp - in_f)))
        return jnp.asarray(wp.T, dtype=compute_dtype)        # (Kp, Np)

    def prep_b(b):
        return jnp.pad(b.astype(jnp.float32), (0, Np - out_f)).reshape(1, Np)

    return dict(
        w_mu=prep_w(weight_mu),
        w_sigma=prep_w(weight_sigma),
        w_eps=prep_w(weight_epsilon),
        b_mu=prep_b(bias_mu),
        b_sigma=prep_b(bias_sigma),
        b_eps=prep_b(bias_epsilon),
        in_features=in_f, out_features=out_f,
        compute_dtype=compute_dtype)


def prepare_linear(weight, bias, compute_dtype=jnp.float32):
    """Amortized path: when eps is resampled less often than forward() is
    called, precompute weight = mu + sigma*eps and bias = bmu + bsig*beps once
    per reset_noise() and stream a single weight tensor (~3x fewer HBM bytes
    per forward than the fused training kernel)."""
    out_f, in_f = weight.shape
    Kp = _round_up(in_f, 128)
    Np = _round_up(out_f, 128)
    wp = jnp.asarray(jnp.pad(weight, ((0, Np - out_f), (0, Kp - in_f))).T,
                     dtype=compute_dtype)
    bp = jnp.pad(bias.astype(jnp.float32), (0, Np - out_f)).reshape(1, Np)
    return dict(w_mu=wp, b_mu=bp, in_features=in_f, out_features=out_f,
                compute_dtype=compute_dtype)


# ----------------------------------------------------------------------------
# Forward pass
# ----------------------------------------------------------------------------

def noisy_linear_forward(x, prep, training=True):
    """x: (B, in_features) -> (B, out_features) float32."""
    B, in_f = x.shape
    assert in_f == prep["in_features"], "in_features mismatch"
    out_f = prep["out_features"]
    cdt = prep["compute_dtype"]
    Kp, Np = prep["w_mu"].shape
    wbytes = jnp.dtype(cdt).itemsize

    n_w = 3 if training else 1
    tm, tn, tk, vmem_limit = _choose_tiles(B, Kp, Np, n_w, wbytes)

    Bp = _round_up(B, tm)
    xp = jnp.pad(x, ((0, Bp - B), (0, Kp - in_f))).astype(cdt)

    grid = (Bp // tm, Np // tn, Kp // tk)
    gi, gj, _ = grid

    x_spec = pl.BlockSpec((tm, tk), lambda i, j, k: (i, k))
    w_spec = pl.BlockSpec((tk, tn), lambda i, j, k: (k, j))
    b_spec = pl.BlockSpec((1, tn), lambda i, j, k: (0, j))
    o_spec = pl.BlockSpec((tm, tn), lambda i, j, k: (i, j))

    flops = 2 * Bp * Kp * Np + (2 * Np * Kp if training else 0)
    bytes_accessed = (gj * Bp * Kp * wbytes            # x re-fetched per j
                      + gi * n_w * Kp * Np * wbytes    # weights re-fetched per i
                      + gi * (3 if training else 1) * Np * 4
                      + Bp * Np * 4)                   # output written once

    cparams = pltpu.CompilerParams(
        dimension_semantics=("parallel", "parallel", "arbitrary"),
        vmem_limit_bytes=vmem_limit)

    if training:
        kernel = _noisy_linear_train_kernel
        inputs = (xp, prep["w_mu"], prep["w_sigma"], prep["w_eps"],
                  prep["b_mu"], prep["b_sigma"], prep["b_eps"])
        in_specs = [x_spec, w_spec, w_spec, w_spec, b_spec, b_spec, b_spec]
    else:
        kernel = _plain_linear_kernel
        inputs = (xp, prep["w_mu"], prep["b_mu"])
        in_specs = [x_spec, w_spec, b_spec]

    yp = pl.pallas_call(
        kernel,
        out_shape=jax.ShapeDtypeStruct((Bp, Np), jnp.float32),
        grid_spec=pltpu.PrefetchScalarGridSpec(
            num_scalar_prefetch=0,
            grid=grid,
            in_specs=in_specs,
            out_specs=o_spec),
        compiler_params=cparams,
        cost_estimate=pl.CostEstimate(flops=flops, transcendentals=0,
                                      bytes_accessed=bytes_accessed),
    )(*inputs)

    return yp[:B, :out_f]


# ----------------------------------------------------------------------------
# Parameter / noise init (re-implementation of reset_parameters + reset_noise)
# ----------------------------------------------------------------------------

def init_noisy_linear_params(key, in_features, out_features, std_init=0.5):
    k_wmu, k_bmu, k_weps, k_beps = jax.random.split(key, 4)
    bound = 1.0 / (in_features ** 0.5)
    sigma_fill = std_init / (in_features ** 0.5)

    weight_mu = jax.random.uniform(
        k_wmu, (out_features, in_features), jnp.float32, -bound, bound)
    weight_sigma = jnp.full((out_features, in_features), sigma_fill, jnp.float32)
    bias_mu = jax.random.uniform(
        k_bmu, (out_features,), jnp.float32, -bound, bound)
    bias_sigma = jnp.full((out_features,), sigma_fill, jnp.float32)

    weight_epsilon = jax.random.normal(
        k_weps, (out_features, in_features), jnp.float32)
    bias_epsilon = jax.random.normal(k_beps, (out_features,), jnp.float32)

    return (weight_mu, weight_sigma, weight_epsilon,
            bias_mu, bias_sigma, bias_epsilon)


# ----------------------------------------------------------------------------
# Self-test
# ----------------------------------------------------------------------------

if __name__ == "__main__":
    def check(B, IN_F, OUT_F, key):
        k_params, k_x = jax.random.split(key)
        params = init_noisy_linear_params(k_params, IN_F, OUT_F, std_init=0.5)
        (wmu, wsig, weps, bmu, bsig, beps) = params
        x = jax.random.normal(k_x, (B, IN_F), jnp.float32)

        # Pure-JAX reference (PyTorch forward semantics).
        w_noisy = wmu + wsig * weps
        b_noisy = bmu + bsig * beps
        ref_train = x @ w_noisy.T + b_noisy
        ref_eval = x @ wmu.T + bmu

        # f32 streaming path.
        prep32 = prepare_noisy_linear(*params, compute_dtype=jnp.float32)
        y_train = noisy_linear_forward(x, prep32, training=True)
        y_eval = noisy_linear_forward(x, prep32, training=False)
        jax.block_until_ready((y_train, y_eval))
        assert y_train.shape == (B, OUT_F) and y_eval.shape == (B, OUT_F)
        assert jnp.allclose(y_train, ref_train, atol=1e-5, rtol=1e-5)
        assert jnp.allclose(y_eval, ref_eval, atol=1e-5, rtol=1e-5)

        # bf16 streaming path (half the HBM bytes; f32 MXU accumulation).
        prep16 = prepare_noisy_linear(*params, compute_dtype=jnp.bfloat16)
        y_train16 = noisy_linear_forward(x, prep16, training=True)
        jax.block_until_ready(y_train16)
        assert jnp.allclose(y_train16, ref_train, atol=5e-2, rtol=5e-2)

        # Amortized precomputed-noise path (single weight stream).
        prep_pre = prepare_linear(w_noisy, b_noisy, compute_dtype=jnp.float32)
        y_amort = noisy_linear_forward(x, prep_pre, training=False)
        jax.block_until_ready(y_amort)
        assert jnp.allclose(y_amort, ref_train, atol=1e-5, rtol=1e-5)

    key = jax.random.PRNGKey(0)
    k1, k2 = jax.random.split(key)
    check(8, 64, 32, k1)      # FlappyBird-DQN-scale hidden layer
    check(5, 200, 144, k2)    # ragged (non-multiple-of-128) shapes

    print("KERNEL_OK")
</pallas_src>

<mosaic_0001>
module attributes {stable_mosaic.version = 11 : i64} {
  func.func @_noisy_linear_train_kernel(%arg0: i32, %arg1: i32, %arg2: i32, %arg3: memref<8x128xf32, #tpu.memory_space<vmem>>, %arg4: memref<128x128xf32, #tpu.memory_space<vmem>>, %arg5: memref<128x128xf32, #tpu.memory_space<vmem>>, %arg6: memref<128x128xf32, #tpu.memory_space<vmem>>, %arg7: memref<1x128xf32, #tpu.memory_space<vmem>>, %arg8: memref<1x128xf32, #tpu.memory_space<vmem>>, %arg9: memref<1x128xf32, #tpu.memory_space<vmem>>, %arg10: memref<8x128xf32, #tpu.memory_space<vmem>>) attributes {dimension_semantics = [#tpu.dimension_semantics<parallel>, #tpu.dimension_semantics<parallel>, #tpu.dimension_semantics<arbitrary>], iteration_bounds = array<i64: 1, 1, 1>, scalar_prefetch = 0 : i64, scratch_operands = 0 : i64, tpu.core_type = #tpu.core_type<tc>, window_params = [{transform_indices = @transform_0, window_bounds = array<i64: 8, 128>}, {transform_indices = @transform_1, window_bounds = array<i64: 128, 128>}, {transform_indices = @transform_2, window_bounds = array<i64: 128, 128>}, {transform_indices = @transform_3, window_bounds = array<i64: 128, 128>}, {transform_indices = @transform_4, window_bounds = array<i64: 1, 128>}, {transform_indices = @transform_5, window_bounds = array<i64: 1, 128>}, {transform_indices = @transform_6, window_bounds = array<i64: 1, 128>}, {transform_indices = @transform_7, window_bounds = array<i64: 8, 128>}]} {
    %c0_i32 = arith.constant 0 : i32
    %0 = arith.cmpi eq, %arg2, %c0_i32 : i32
    %1 = arith.extui %0 : i1 to i32
    %c0_i32_0 = arith.constant 0 : i32
    %2 = arith.cmpi ne, %1, %c0_i32_0 : i32
    scf.if %2 {
      %c0_12 = arith.constant 0 : index
      %c0_13 = arith.constant 0 : index
      %13 = vector.load %arg7[%c0_12, %c0_13] : memref<1x128xf32, #tpu.memory_space<vmem>>, vector<1x128xf32>
      %c0_14 = arith.constant 0 : index
      %c0_15 = arith.constant 0 : index
      %14 = vector.load %arg8[%c0_14, %c0_15] : memref<1x128xf32, #tpu.memory_space<vmem>>, vector<1x128xf32>
      %c0_16 = arith.constant 0 : index
      %c0_17 = arith.constant 0 : index
      %15 = vector.load %arg9[%c0_16, %c0_17] : memref<1x128xf32, #tpu.memory_space<vmem>>, vector<1x128xf32>
      %16 = arith.mulf %14, %15 : vector<1x128xf32>
      %17 = arith.addf %13, %16 : vector<1x128xf32>
      %18 = vector.shape_cast %17 : vector<1x128xf32> to vector<1x128xf32>
      %19 = vector.broadcast %18 : vector<1x128xf32> to vector<8x128xf32>
      %c0_18 = arith.constant 0 : index
      %c0_19 = arith.constant 0 : index
      %20 = vector.load %arg10[%c0_18, %c0_19] : memref<8x128xf32, #tpu.memory_space<vmem>>, vector<8x128xf32>
      tpu.vector_store %arg10[%c0_18, %c0_19], %19 {strides = array<i32>} : memref<8x128xf32, #tpu.memory_space<vmem>>, vector<8x128xf32>,
    } else {
    }
    %c0 = arith.constant 0 : index
    %c0_1 = arith.constant 0 : index
    %3 = vector.load %arg4[%c0, %c0_1] : memref<128x128xf32, #tpu.memory_space<vmem>>, vector<128x128xf32>
    %c0_2 = arith.constant 0 : index
    %c0_3 = arith.constant 0 : index
    %4 = vector.load %arg5[%c0_2, %c0_3] : memref<128x128xf32, #tpu.memory_space<vmem>>, vector<128x128xf32>
    %c0_4 = arith.constant 0 : index
    %c0_5 = arith.constant 0 : index
    %5 = vector.load %arg6[%c0_4, %c0_5] : memref<128x128xf32, #tpu.memory_space<vmem>>, vector<128x128xf32>
    %6 = arith.mulf %4, %5 : vector<128x128xf32>
    %7 = arith.addf %3, %6 : vector<128x128xf32>
    %c0_6 = arith.constant 0 : index
    %c0_7 = arith.constant 0 : index
    %8 = vector.load %arg10[%c0_6, %c0_7] : memref<8x128xf32, #tpu.memory_space<vmem>>, vector<8x128xf32>
    %c0_8 = arith.constant 0 : index
    %c0_9 = arith.constant 0 : index
    %9 = vector.load %arg3[%c0_8, %c0_9] : memref<8x128xf32, #tpu.memory_space<vmem>>, vector<8x128xf32>
    %cst = arith.constant dense<0.000000e+00> : vector<8x128xf32>
    %10 = tpu.matmul %9, %7, %cst {dimension_numbers = #tpu.dot_dimension_numbers<[1], [0], [0], [1], [0, 0, 1, 1], [], []>} : vector<8x128xf32>, vector<128x128xf32>, vector<8x128xf32> -> vector<8x128xf32>
    %11 = arith.addf %8, %10 : vector<8x128xf32>
    %c0_10 = arith.constant 0 : index
    %c0_11 = arith.constant 0 : index
    %12 = vector.load %arg10[%c0_10, %c0_11] : memref<8x128xf32, #tpu.memory_space<vmem>>, vector<8x128xf32>
    tpu.vector_store %arg10[%c0_10, %c0_11], %11 {strides = array<i32>} : memref<8x128xf32, #tpu.memory_space<vmem>>, vector<8x128xf32>,
    return
  }
  func.func @transform_0(%arg0: i32, %arg1: i32, %arg2: i32) -> (i32, i32) {
    %c0_i32 = arith.constant 0 : i32
    return %arg0, %arg2 : i32, i32
  }
  func.func @transform_1(%arg0: i32, %arg1: i32, %arg2: i32) -> (i32, i32) {
    %c0_i32 = arith.constant 0 : i32
    return %arg2, %arg1 : i32, i32
  }
  func.func @transform_2(%arg0: i32, %arg1: i32, %arg2: i32) -> (i32, i32) {
    %c0_i32 = arith.constant 0 : i32
    return %arg2, %arg1 : i32, i32
  }
  func.func @transform_3(%arg0: i32, %arg1: i32, %arg2: i32) -> (i32, i32) {
    %c0_i32 = arith.constant 0 : i32
    return %arg2, %arg1 : i32, i32
  }
  func.func @transform_4(%arg0: i32, %arg1: i32, %arg2: i32) -> (i32, i32) {
    %c0_i32 = arith.constant 0 : i32
    %c0_i32_0 = arith.constant 0 : i32
    return %c0_i32, %arg1 : i32, i32
  }
  func.func @transform_5(%arg0: i32, %arg1: i32, %arg2: i32) -> (i32, i32) {
    %c0_i32 = arith.constant 0 : i32
    %c0_i32_0 = arith.constant 0 : i32
    return %c0_i32, %arg1 : i32, i32
  }
  func.func @transform_6(%arg0: i32, %arg1: i32, %arg2: i32) -> (i32, i32) {
    %c0_i32 = arith.constant 0 : i32
    %c0_i32_0 = arith.constant 0 : i32
    return %c0_i32, %arg1 : i32, i32
  }
  func.func @transform_7(%arg0: i32, %arg1: i32, %arg2: i32) -> (i32, i32) {
    %c0_i32 = arith.constant 0 : i32
    return %arg0, %arg1 : i32, i32
  }
}

</mosaic_0001>

<llo_original>
// kernel: tpu_custom_call.1
$region0: #{tpu_custom_call.1}
  #allocation0 [shape = 'u32[]', space=smem, size = 0x4, offset = 0x4, fixed_abs, tag = 'smem constant byte address 0x4 - core index']
  #allocation1 [shape = 'u32[144,128]{1,0:T(1,128)}', space=vmem, size = 0x12000, scoped, tag = 'internal scratch']
  %s0 = inlined_call_operand.hbm [shape: f32[8,128], index: 0, kind: input, shape index: {}]
  %s1 = inlined_call_operand.hbm [shape: f32[128,128], index: 1, kind: input, shape index: {}]
  %s2 = inlined_call_operand.hbm [shape: f32[128,128], index: 2, kind: input, shape index: {}]
  %s3 = inlined_call_operand.hbm [shape: f32[128,128], index: 3, kind: input, shape index: {}]
  %s4 = inlined_call_operand.vmem [shape: f32[1,128], index: 4, kind: input, shape index: {}]
  %s5 = inlined_call_operand.vmem [shape: f32[1,128], index: 5, kind: input, shape index: {}]
  %s6 = inlined_call_operand.vmem [shape: f32[1,128], index: 6, kind: input, shape index: {}]
  %s7 = inlined_call_operand.hbm [shape: f32[8,128], index: 7, kind: output, shape index: {}]
  %s8 = sld [smem:[#allocation0]]
  $region58: #{tpu_custom_call.1} parent=0
    _
  %s10 = ssub.s32 1, %s8
  %s11 = scalar_select 0, %s10, %s8
  $region1: #{tpu_custom_call.1} parent=0
    #allocation2 [shape = 'u8[4096]{0}', space=vmem, size = 0x1000, scoped, tag = 'input window, operand 0, single buffered']
    #allocation3 [shape = 's32[1]{0}', space=sflag, size = 0x4, scoped, tag = 'scoped memory for tpu_custom_call.1']
    #allocation4 [shape = 's32[1]{0}', space=sflag, size = 0x4, scoped, tag = 'scoped memory for tpu_custom_call.1']
    #allocation5 [shape = 'u8[65536]{0}', space=vmem, size = 0x10000, scoped, tag = 'input window, operand 1, single buffered']
    #allocation6 [shape = 's32[1]{0}', space=sflag, size = 0x4, scoped, tag = 'scoped memory for tpu_custom_call.1']
    #allocation7 [shape = 'u8[65536]{0}', space=vmem, size = 0x10000, scoped, tag = 'input window, operand 2, single buffered']
    #allocation8 [shape = 'u8[65536]{0}', space=vmem, size = 0x10000, scoped, tag = 'input window, operand 3, single buffered']
    #allocation9 [shape = 's32[1]{0}', space=sflag, size = 0x4, scoped, tag = 'scoped memory for tpu_custom_call.1']
    #allocation10 [shape = 'u8[4096]{0}', space=vmem, size = 0x1000, scoped, tag = 'output window, operand 0, single buffered']
    %12 = vsyncpa [#allocation3], 0
    %13 = vsyncpa [#allocation6], 0
    %14 = vsyncpa [#allocation9], 0
    %15 = vsyncpa [#allocation4], 0
    // Predicated region
    $region2: #{tpu_custom_call.1} parent=1 // pred_check
      _
    $region3: #{tpu_custom_call.1} parent=1 // pred_check_branch
      %17 = sbr.rel (0) target = $region5
    $region4: #{tpu_custom_call.1} parent=1 // pred_region
      %s19 = ssub.s32 128, 128
      %20 = vsyncadd [#allocation3], %s19
      %s22 = sshll.u32 [#allocation2], 4
      %s23 = int_to_ptr.vmem [resolvable:$true] %s22
      %25 = dma.hbm_to_vmem [thread:$0]  %s0, 128, %s23, [#allocation3]
    $region5: #{tpu_custom_call.1} parent=1 // pred_fallthru
      _
    // Predicated region
    $region6: #{tpu_custom_call.1} parent=1 // pred_check
      _
    $region7: #{tpu_custom_call.1} parent=1 // pred_check_branch
      %27 = sbr.rel (0) target = $region9
    $region8: #{tpu_custom_call.1} parent=1 // pred_region
      %s29 = ssub.s32 2048, 2048
      %30 = vsyncadd [#allocation6], %s29
      %s31 = sshll.u32 [#allocation5], 4
      %s32 = int_to_ptr.vmem [resolvable:$true] %s31
      %37 = dma.hbm_to_vmem [thread:$0]  %s1, 2048, %s32, [#allocation6], 128, 128, 8
    $region9: #{tpu_custom_call.1} parent=1 // pred_fallthru
      _
    // Predicated region
    $region10: #{tpu_custom_call.1} parent=1 // pred_check
      _
    $region11: #{tpu_custom_call.1} parent=1 // pred_check_branch
      %39 = sbr.rel (0) target = $region13
    $region12: #{tpu_custom_call.1} parent=1 // pred_region
      %s41 = ssub.s32 2048, 2048
      %42 = vsyncadd [#allocation6], %s41
      %s43 = sshll.u32 [#allocation7], 4
      %s44 = int_to_ptr.vmem [resolvable:$true] %s43
      %49 = dma.hbm_to_vmem [thread:$0]  %s2, 2048, %s44, [#allocation6], 128, 128, 8
    $region13: #{tpu_custom_call.1} parent=1 // pred_fallthru
      _
    // Predicated region
    $region14: #{tpu_custom_call.1} parent=1 // pred_check
      _
    $region15: #{tpu_custom_call.1} parent=1 // pred_check_branch
      %51 = sbr.rel (0) target = $region17
    $region16: #{tpu_custom_call.1} parent=1 // pred_region
      %s53 = ssub.s32 2048, 2048
      %54 = vsyncadd [#allocation9], %s53
      %s55 = sshll.u32 [#allocation8], 4
      %s56 = int_to_ptr.vmem [resolvable:$true] %s55
      %61 = dma.hbm_to_vmem [thread:$0]  %s3, 2048, %s56, [#allocation9], 128, 128, 8
    $region17: #{tpu_custom_call.1} parent=1 // pred_fallthru
      _
    // Predicated region
    $region18: #{tpu_custom_call.1} parent=1 // pred_check
      _
    $region19: #{tpu_custom_call.1} parent=1 // pred_check_branch
      %63 = sbr.rel (0) target = $region21
    $region20: #{tpu_custom_call.1} parent=1 // pred_region
      _
    $region21: #{tpu_custom_call.1} parent=1 // pred_fallthru
      _
    // Predicated region
    $region22: #{tpu_custom_call.1} parent=1 // pred_check
      _
    $region23: #{tpu_custom_call.1} parent=1 // pred_check_branch
      %65 = sbr.rel (0) target = $region25
    $region24: #{tpu_custom_call.1} parent=1 // pred_region
      _
    $region25: #{tpu_custom_call.1} parent=1 // pred_fallthru
      _
    // Predicated region
    $region26: #{tpu_custom_call.1} parent=1 // pred_check
      _
    $region27: #{tpu_custom_call.1} parent=1 // pred_check_branch
      %67 = sbr.rel (0) target = $region29
    $region28: #{tpu_custom_call.1} parent=1 // pred_region
      _
    $region29: #{tpu_custom_call.1} parent=1 // pred_fallthru
      _
    // Predicated region
    $region30: #{tpu_custom_call.1} parent=1 // pred_check
      _
    $region31: #{tpu_custom_call.1} parent=1 // pred_check_branch
      %69 = sbr.rel (0) target = $region33
    $region32: #{tpu_custom_call.1} parent=1 // pred_region
      %70 = dma.done [#allocation3], 128
    $region33: #{tpu_custom_call.1} parent=1 // pred_fallthru
      _
    // Predicated region
    $region34: #{tpu_custom_call.1} parent=1 // pred_check
      _
    $region35: #{tpu_custom_call.1} parent=1 // pred_check_branch
      %72 = sbr.rel (0) target = $region37
    $region36: #{tpu_custom_call.1} parent=1 // pred_region
      %73 = dma.done [#allocation6], 2048
    $region37: #{tpu_custom_call.1} parent=1 // pred_fallthru
      _
    // Predicated region
    $region38: #{tpu_custom_call.1} parent=1 // pred_check
      _
    $region39: #{tpu_custom_call.1} parent=1 // pred_check_branch
      %75 = sbr.rel (0) target = $region41
    $region40: #{tpu_custom_call.1} parent=1 // pred_region
      %76 = dma.done [#allocation6], 2048
    $region41: #{tpu_custom_call.1} parent=1 // pred_fallthru
      _
    // Predicated region
    $region42: #{tpu_custom_call.1} parent=1 // pred_check
      _
    $region43: #{tpu_custom_call.1} parent=1 // pred_check_branch
      %78 = sbr.rel (0) target = $region45
    $region44: #{tpu_custom_call.1} parent=1 // pred_region
      %79 = dma.done [#allocation9], 2048
    $region45: #{tpu_custom_call.1} parent=1 // pred_fallthru
      _
    %p80 = scmp.eq.s32.totalorder 0, 0
    // Predicated region
    $region46: #{tpu_custom_call.1} parent=1 // pred_check
      %p81 = pneg %p80
    $region47: #{tpu_custom_call.1} parent=1 // pred_check_branch
      %83 = sbr.rel (%p81) target = $region49
    $region48: #{tpu_custom_call.1} parent=1 // pred_region
      %v84 = vld [vmem:[%s4] sm:$0x1]
      %v85 = vld [vmem:[%s5] sm:$0x1]
      %v86 = vld [vmem:[%s6] sm:$0x1]
      %v87 = vmul.f32 %v85, %v86
      %v88 = vadd.f32 %v84, %v87
      %v90 = vlaneseq
      %v91 = vshrl.u32 %v90, 7
      %v92 = vsub.s32 0, %v91
      %v93 = vrot.slane %v88, %v92
      %95 = vst [vmem:[#allocation10] sm:$0xff] %v93
    $region49: #{tpu_custom_call.1} parent=1 // pred_fallthru
      _
    %v96 = vld [vmem:[#allocation5] sm:$0xff]
    %v97 = vld [vmem:[#allocation5 + $0x8] sm:$0xff]
    %v98 = vld [vmem:[#allocation5 + $0x10] sm:$0xff]
    %v99 = vld [vmem:[#allocation5 + $0x18] sm:$0xff]
    %v100 = vld [vmem:[#allocation5 + $0x20] sm:$0xff]
    %v101 = vld [vmem:[#allocation5 + $0x28] sm:$0xff]
    %v102 = vld [vmem:[#allocation5 + $0x30] sm:$0xff]
    %v103 = vld [vmem:[#allocation5 + $0x38] sm:$0xff]
    %v104 = vld [vmem:[#allocation5 + $0x40] sm:$0xff]
    %v105 = vld [vmem:[#allocation5 + $0x48] sm:$0xff]
    %v106 = vld [vmem:[#allocation5 + $0x50] sm:$0xff]
    %v107 = vld [vmem:[#allocation5 + $0x58] sm:$0xff]
    %v108 = vld [vmem:[#allocation5 + $0x60] sm:$0xff]
    %v109 = vld [vmem:[#allocation5 + $0x68] sm:$0xff]
    %v110 = vld [vmem:[#allocation5 + $0x70] sm:$0xff]
    %v111 = vld [vmem:[#allocation5 + $0x78] sm:$0xff]
    %v112 = vld [vmem:[#allocation7] sm:$0xff]
    %v113 = vld [vmem:[#allocation7 + $0x8] sm:$0xff]
    %v114 = vld [vmem:[#allocation7 + $0x10] sm:$0xff]
    %v115 = vld [vmem:[#allocation7 + $0x18] sm:$0xff]
    %v116 = vld [vmem:[#allocation7 + $0x20] sm:$0xff]
    %v117 = vld [vmem:[#allocation7 + $0x28] sm:$0xff]
    %v118 = vld [vmem:[#allocation7 + $0x30] sm:$0xff]
    %v119 = vld [vmem:[#allocation7 + $0x38] sm:$0xff]
    %v120 = vld [vmem:[#allocation7 + $0x40] sm:$0xff]
    %v121 = vld [vmem:[#allocation7 + $0x48] sm:$0xff]
    %v122 = vld [vmem:[#allocation7 + $0x50] sm:$0xff]
    %v123 = vld [vmem:[#allocation7 + $0x58] sm:$0xff]
    %v124 = vld [vmem:[#allocation7 + $0x60] sm:$0xff]
    %v125 = vld [vmem:[#allocation7 + $0x68] sm:$0xff]
    %v126 = vld [vmem:[#allocation7 + $0x70] sm:$0xff]
    %v127 = vld [vmem:[#allocation7 + $0x78] sm:$0xff]
    %v128 = vld [vmem:[#allocation8] sm:$0xff]
    %v129 = vld [vmem:[#allocation8 + $0x8] sm:$0xff]
    %v130 = vld [vmem:[#allocation8 + $0x10] sm:$0xff]
    %v131 = vld [vmem:[#allocation8 + $0x18] sm:$0xff]
    %v132 = vld [vmem:[#allocation8 + $0x20] sm:$0xff]
    %v133 = vld [vmem:[#allocation8 + $0x28] sm:$0xff]
    %v134 = vld [vmem:[#allocation8 + $0x30] sm:$0xff]
    %v135 = vld [vmem:[#allocation8 + $0x38] sm:$0xff]
    %v136 = vld [vmem:[#allocation8 + $0x40] sm:$0xff]
    %v137 = vld [vmem:[#allocation8 + $0x48] sm:$0xff]
    %v138 = vld [vmem:[#allocation8 + $0x50] sm:$0xff]
    %v139 = vld [vmem:[#allocation8 + $0x58] sm:$0xff]
    %v140 = vld [vmem:[#allocation8 + $0x60] sm:$0xff]
    %v141 = vld [vmem:[#allocation8 + $0x68] sm:$0xff]
    %v142 = vld [vmem:[#allocation8 + $0x70] sm:$0xff]
    %v143 = vld [vmem:[#allocation8 + $0x78] sm:$0xff]
    %v144 = vmul.f32 %v112, %v128
    %v145 = vmul.f32 %v113, %v129
    %v146 = vmul.f32 %v114, %v130
    %v147 = vmul.f32 %v115, %v131
    %v148 = vmul.f32 %v116, %v132
    %v149 = vmul.f32 %v117, %v133
    %v150 = vmul.f32 %v118, %v134
    %v151 = vmul.f32 %v119, %v135
    %v152 = vmul.f32 %v120, %v136
    %v153 = vmul.f32 %v121, %v137
    %v154 = vmul.f32 %v122, %v138
    %v155 = vmul.f32 %v123, %v139
    %v156 = vmul.f32 %v124, %v140
    %v157 = vmul.f32 %v125, %v141
    %v158 = vmul.f32 %v126, %v142
    %v159 = vmul.f32 %v127, %v143
    %v160 = vadd.f32 %v96, %v144
    %v161 = vadd.f32 %v97, %v145
    %v162 = vadd.f32 %v98, %v146
    %v163 = vadd.f32 %v99, %v147
    %v164 = vadd.f32 %v100, %v148
    %v165 = vadd.f32 %v101, %v149
    %v166 = vadd.f32 %v102, %v150
    %v167 = vadd.f32 %v103, %v151
    %v168 = vadd.f32 %v104, %v152
    %v169 = vadd.f32 %v105, %v153
    %v170 = vadd.f32 %v106, %v154
    %v171 = vadd.f32 %v107, %v155
    %v172 = vadd.f32 %v108, %v156
    %v173 = vadd.f32 %v109, %v157
    %v174 = vadd.f32 %v110, %v158
    %v175 = vadd.f32 %v111, %v159
    %v176 = vld [vmem:[#allocation10] sm:$0xff]
    %v177 = vld [vmem:[#allocation2] sm:$0xff]
    %178 = vmatprep.subr.mxu0 0.0
    %179 = vmatpush1.msra.mxu0 %v160
    %180 = vmatprep.subr.mxu0 0.0
    %181 = vmatpush1.msra.mxu0 %v161
    %182 = vmatprep.subr.mxu0 0.0
    %183 = vmatpush1.msra.mxu0 %v162
    %184 = vmatprep.subr.mxu0 0.0
    %185 = vmatpush1.msra.mxu0 %v163
    %186 = vmatprep.subr.mxu0 0.0
    %187 = vmatpush1.msra.mxu0 %v164
    %188 = vmatprep.subr.mxu0 0.0
    %189 = vmatpush1.msra.mxu0 %v165
    %190 = vmatprep.subr.mxu0 0.0
    %191 = vmatpush1.msra.mxu0 %v166
    %192 = vmatprep.subr.mxu0 0.0
    %193 = vmatpush1.msra.mxu0 %v167
    %194 = vmatprep.subr.mxu0 0.0
    %195 = vmatpush1.msra.mxu0 %v168
    %196 = vmatprep.subr.mxu0 0.0
    %197 = vmatpush1.msra.mxu0 %v169
    %198 = vmatprep.subr.mxu0 0.0
    %199 = vmatpush1.msra.mxu0 %v170
    %200 = vmatprep.subr.mxu0 0.0
    %201 = vmatpush1.msra.mxu0 %v171
    %202 = vmatprep.subr.mxu0 0.0
    %203 = vmatpush1.msra.mxu0 %v172
    %204 = vmatprep.subr.mxu0 0.0
    %205 = vmatpush1.msra.mxu0 %v173
    %206 = vmatprep.subr.mxu0 0.0
    %207 = vmatpush1.msra.mxu0 %v174
    %208 = vmatprep.subr.mxu0 0.0
    %209 = vmatpush1.msra.mxu0 %v175
    %210 = vmatprep.subr.mxu0 0.0
    %211 = vmatpush1.msra.mxu0 0.0
    %212 = vmatprep.subr.mxu0 0.0
    %213 = vmatpush1.msra.mxu0 0.0
    %214 = vmatprep.subr.mxu0 0.0
    %215 = vmatpush1.msra.mxu0 0.0
    %216 = vmatprep.subr.mxu0 0.0
    %217 = vmatpush1.msra.mxu0 0.0
    %218 = vmatprep.subr.mxu0 0.0
    %219 = vmatpush1.msra.mxu0 0.0
    %220 = vmatprep.subr.mxu0 0.0
    %221 = vmatpush1.msra.mxu0 0.0
    %222 = vmatprep.subr.mxu0 0.0
    %223 = vmatpush1.msra.mxu0 0.0
    %224 = vmatprep.subr.mxu0 0.0
    %225 = vmatpush1.msra.mxu0 0.0
    %226 = vmatprep.subr.mxu0 0.0
    %227 = vmatpush1.msra.mxu0 0.0
    %228 = vmatprep.subr.mxu0 0.0
    %229 = vmatpush1.msra.mxu0 0.0
    %230 = vmatprep.subr.mxu0 0.0
    %231 = vmatpush1.msra.mxu0 0.0
    %232 = vmatprep.subr.mxu0 0.0
    %233 = vmatpush1.msra.mxu0 0.0
    %234 = vmatprep.subr.mxu0 0.0
    %235 = vmatpush1.msra.mxu0 0.0
    %236 = vmatprep.subr.mxu0 0.0
    %237 = vmatpush1.msra.mxu0 0.0
    %238 = vmatprep.subr.mxu0 0.0
    %239 = vmatpush1.msra.mxu0 0.0
    %240 = vmatprep.subr.mxu0 0.0
    %241 = vmatpush1.msra.mxu0 0.0
    %242 = vmatprep.mubr.f32.mxu0 0.0
    %243 = vmatmul.mubr.f32.gmra.mrb[0].mxu0 %v177
    %v244 = vpop.f32.mrb[0].mxu0
    %v245 = vadd.f32 0.0, %v244
    %v246 = vpop.f32.mrb[0].mxu0
    %247 = vdwg.mxu0
    %v248 = vadd.f32 %v176, %v245
    %249 = vst [vmem:[#allocation10] sm:$0xff] %v248
    // Predicated region
    $region50: #{tpu_custom_call.1} parent=1 // pred_check
      _
    $region51: #{tpu_custom_call.1} parent=1 // pred_check_branch
      %251 = sbr.rel (0) target = $region53
    $region52: #{tpu_custom_call.1} parent=1 // pred_region
      %s253 = ssub.s32 128, 128
      %254 = vsyncadd [#allocation4], %s253
      %s256 = sshll.u32 [#allocation10], 4
      %s257 = int_to_ptr.vmem [resolvable:$true] %s256
      %259 = dma.vmem_to_hbm [thread:$0]  %s257, 128, %s7, [#allocation4]
    $region53: #{tpu_custom_call.1} parent=1 // pred_fallthru
      _
    // Predicated region
    $region54: #{tpu_custom_call.1} parent=1 // pred_check
      _
    $region55: #{tpu_custom_call.1} parent=1 // pred_check_branch
      %261 = sbr.rel (0) target = $region57
    $region56: #{tpu_custom_call.1} parent=1 // pred_region
      %262 = dma.done [#allocation4], 128
    $region57: #{tpu_custom_call.1} parent=1 // pred_fallthru
      _
    %263 = vsyncpa [#allocation3], 1
    %264 = vsyncpa [#allocation6], 1
    %265 = vsyncpa [#allocation9], 1
    %266 = vsyncpa [#allocation4], 1

</llo_original>
